<compile_context>
chip_gen: v5e
topology: v5e:2x2
jax: 0.10.0
libtpu: 0.0.40
codegen_flags: <defaults>
</compile_context>

<pallas_src>
import jax
import jax.numpy as jnp
from jax import lax
from jax.experimental import pallas as pl
from jax.experimental.pallas import tpu as pltpu


def _round_up(x, m):
    return (x + m - 1) // m * m


def _extract_patches(x_nhwc, K, stride, pad):
    """im2col with zero padding: (N, Ho, Wo, K*K, C); tap order (ki, kj, c)."""
    N, H, W, C = x_nhwc.shape
    xp = jnp.pad(x_nhwc, ((0, 0), (pad, pad), (pad, pad), (0, 0)))
    Ho = (H + 2 * pad - K) // stride + 1
    Wo = (W + 2 * pad - K) // stride + 1
    slabs = []
    for di in range(K):
        for dj in range(K):
            slabs.append(lax.slice(
                xp,
                (0, di, dj, 0),
                (N, di + (Ho - 1) * stride + 1, dj + (Wo - 1) * stride + 1, C),
                (1, stride, stride, 1)))
    return jnp.stack(slabs, axis=3), Ho, Wo


def _fused_gemm_stats_kernel(lhs_ref, w_ref, y_ref, stat_ref):
    # lhs_ref:  (tm, K_tot)   bf16  [im2col conv patches | max-pooled pixels]
    # w_ref:    (K_tot, Cout) bf16  [W_conv ; W_1x1]
    # y_ref:    (tm, Cout)    f32   pre-BN activations (only real channels)
    # stat_ref: (16, Cout)    f32   resident per-split partial:
    #                               rows 0:8 = sum copies, rows 8:16 = sum_sq copies
    y = jnp.dot(lhs_ref[...], w_ref[...], preferred_element_type=jnp.float32)
    y_ref[...] = y

    @pl.when(pl.program_id(1) == 0)
    def _():
        stat_ref[...] = jnp.zeros_like(stat_ref)

    # Batch statistics on the MXU (it has plenty of slack at K_tot ~ 40):
    # sum = 1 @ y and sum_sq = 1 @ (y*y) keep the per-step cross-sublane
    # reductions off the XLU in the steady-state loop.  The 8 identical result
    # rows cost nothing extra on the MXU and keep native (8, 128) shapes.
    ones_rows = jnp.ones((8, y.shape[0]), jnp.float32)
    s1 = jnp.dot(ones_rows, y, preferred_element_type=jnp.float32)       # (8, Cout)
    s2 = jnp.dot(ones_rows, y * y, preferred_element_type=jnp.float32)   # (8, Cout)
    stat_ref[0:8, :] = stat_ref[0:8, :] + s1
    stat_ref[8:16, :] = stat_ref[8:16, :] + s2


def residual_sampling(x_nchw, w_conv, w_1x1, gamma, beta, *,
                      kernel_size, stride, padding, eps=1e-5,
                      tm=1024, n_splits=1):
    """BatchNorm2d( Conv1x1(MaxPool2d(x)) + Conv2d(x) ), training-mode BN stats.

    n_splits: leading "parallel" row-split axis.  Use 1 on single-TensorCore
    chips (v5e/v6e), 2 on v7x (dual TC megacore).
    """
    N, Cin, H, W = x_nchw.shape
    Cout = w_conv.shape[0]
    K = kernel_size
    assert padding < kernel_size, "a pooling window must contain >=1 valid pixel"
    KK = K * K
    KKC = KK * Cin
    K_tot = KKC + Cin

    # --- wrapper-side prep, all in bf16 (no f32 inflated slab) ---------------
    x = jnp.transpose(x_nchw, (0, 2, 3, 1)).astype(jnp.bfloat16)         # NHWC
    patches, Ho, Wo = _extract_patches(x, K, stride, padding)            # conv taps
    pooled = lax.reduce_window(                                          # MaxPool2d
        x, jnp.array(-jnp.inf, dtype=x.dtype), lax.max,
        (1, K, K, 1), (1, stride, stride, 1),
        ((0, 0), (padding, padding), (padding, padding), (0, 0)))
    M = N * Ho * Wo
    # Single pre-concatenated LHS = [conv patches | pooled pixels]; XLA fuses
    # this with the reshape / pad, so the kernel body is a pure GEMM + stats.
    lhs = jnp.concatenate(
        [patches.reshape(M, KKC), pooled.reshape(M, Cin)], axis=1)
    # TODO(synk): for large H*W*Cin, avoid the K*K im2col inflation by forming
    # taps in-kernel from overlapping NHWC row windows (strided ref slices).

    # RHS = [conv weight in (ki, kj, ci) im2col order ; 1x1 weight].
    wc = jnp.transpose(w_conv, (2, 3, 1, 0)).reshape(KKC, Cout)
    w1 = jnp.transpose(w_1x1.reshape(Cout, Cin), (1, 0))
    w_full = jnp.concatenate([wc, w1], axis=0).astype(jnp.bfloat16)      # (K_tot, Cout)

    # Row tiling; tm rounded to 16 for native bf16 (16, 128) sublane packing.
    # Zero-padded rows produce y == 0 exactly and contribute nothing to
    # sum / sum_sq (division is by the real M).  Keep the pad value at 0 and
    # the GEMM bias-free or this invariant breaks.
    tm_eff = min(tm, _round_up(pl.cdiv(M, n_splits), 16))
    bps = pl.cdiv(M, n_splits * tm_eff)               # row blocks per split
    M_pad = n_splits * bps * tm_eff
    if M_pad > M:
        lhs = jnp.pad(lhs, ((0, M_pad - M), (0, 0)))
    lhs = lhs.astype(jnp.bfloat16)

    row_map = lambda c, i: (c * bps + i, 0)

    y, stats = pl.pallas_call(
        _fused_gemm_stats_kernel,
        out_shape=(jax.ShapeDtypeStruct((M_pad, Cout), jnp.float32),
                   jax.ShapeDtypeStruct((n_splits, 16, Cout), jnp.float32)),
        grid_spec=pltpu.PrefetchScalarGridSpec(
            num_scalar_prefetch=0, grid=(n_splits, bps),
            in_specs=[
                pl.BlockSpec((tm_eff, K_tot), row_map),
                pl.BlockSpec((K_tot, Cout), lambda c, i: (0, 0)),
            ],
            out_specs=(
                pl.BlockSpec((tm_eff, Cout), row_map),
                pl.BlockSpec((None, 16, Cout), lambda c, i: (c, 0, 0)),
            )),
        compiler_params=pltpu.CompilerParams(
            dimension_semantics=("parallel", "arbitrary"),
            vmem_limit_bytes=32 * 1024 * 1024),    # also safe on v7x (64 MiB/TC)
    )(lhs, w_full)

    # BatchNorm2d (training-mode batch statistics); the affine apply stays in
    # jnp so XLA fuses it with the slice / reshape / transpose.
    s = jnp.sum(stats, axis=0)                    # reduce per-split partials
    mean = s[0] / M                               # row 0  = sum
    var = jnp.maximum(s[8] / M - mean * mean, 0.0)   # row 8 = sum of squares
    # TODO(synk): E[y^2]-mean^2 in f32 can cancel for large-mean activations;
    # use a shifted / two-pass variance if that regime matters.
    scale = gamma * lax.rsqrt(var + eps)
    shift = beta - mean * scale

    out = y[:M] * scale + shift
    return jnp.transpose(out.reshape(N, Ho, Wo, Cout), (0, 3, 1, 2))     # NCHW


def _reference(x, w_conv, w_1x1, gamma, beta, *, kernel_size, stride, padding, eps=1e-5):
    K, s, p = kernel_size, stride, padding
    mp = lax.reduce_window(x, -jnp.inf, lax.max,
                           (1, 1, K, K), (1, 1, s, s),
                           ((0, 0), (0, 0), (p, p), (p, p)))
    a = lax.conv_general_dilated(mp, w_1x1, (1, 1), 'VALID',
                                 dimension_numbers=('NCHW', 'OIHW', 'NCHW'))
    b = lax.conv_general_dilated(x, w_conv, (s, s), ((p, p), (p, p)),
                                 dimension_numbers=('NCHW', 'OIHW', 'NCHW'))
    y = a + b
    mean = jnp.mean(y, axis=(0, 2, 3), keepdims=True)
    var = jnp.var(y, axis=(0, 2, 3), keepdims=True)
    yhat = (y - mean) / jnp.sqrt(var + eps)
    return yhat * gamma.reshape(1, -1, 1, 1) + beta.reshape(1, -1, 1, 1)


if __name__ == "__main__":
    # Residual_Sampling(in_dim=4, out_dim=8, kernel_size=3, stride=2, padding=1)
    N, Cin, H, W = 2, 4, 16, 16
    Cout, K, S, P = 8, 3, 2, 1

    key = jax.random.PRNGKey(0)
    kx, kc, k1, kg, kb = jax.random.split(key, 5)
    x = jax.random.normal(kx, (N, Cin, H, W), jnp.float32)
    w_conv = jax.random.normal(kc, (Cout, Cin, K, K), jnp.float32) * 0.2
    w_1x1 = jax.random.normal(k1, (Cout, Cin, 1, 1), jnp.float32) * 0.2
    gamma = 1.0 + 0.1 * jax.random.normal(kg, (Cout,), jnp.float32)
    beta = 0.1 * jax.random.normal(kb, (Cout,), jnp.float32)

    out = residual_sampling(x, w_conv, w_1x1, gamma, beta,
                            kernel_size=K, stride=S, padding=P)
    out = jax.block_until_ready(out)

    ref = _reference(x, w_conv, w_1x1, gamma, beta,
                     kernel_size=K, stride=S, padding=P)
    assert out.shape == (N, Cout, H // S, W // S), out.shape
    assert jnp.allclose(out, ref, atol=5e-2, rtol=5e-2), \
        float(jnp.max(jnp.abs(out - ref)))

    print("KERNEL_OK")
</pallas_src>

<mosaic_0001>
module attributes {stable_mosaic.version = 11 : i64} {
  func.func @_fused_gemm_stats_kernel(%arg0: i32, %arg1: i32, %arg2: memref<128x40xbf16, #tpu.memory_space<vmem>>, %arg3: memref<40x8xbf16, #tpu.memory_space<vmem>>, %arg4: memref<128x8xf32, #tpu.memory_space<vmem>>, %arg5: memref<1x16x8xf32, #tpu.memory_space<vmem>>) attributes {dimension_semantics = [#tpu.dimension_semantics<parallel>, #tpu.dimension_semantics<arbitrary>], iteration_bounds = array<i64: 1, 1>, scalar_prefetch = 0 : i64, scratch_operands = 0 : i64, tpu.core_type = #tpu.core_type<tc>, window_params = [{transform_indices = @transform_0, window_bounds = array<i64: 128, 40>}, {pipeline_mode = #tpu.pipeline_mode<synchronous>, transform_indices = @transform_1, window_bounds = array<i64: 40, 8>}, {transform_indices = @transform_2, window_bounds = array<i64: 128, 8>}, {transform_indices = @transform_3, window_bounds = array<i64: 1, 16, 8>}]} {
    %c0 = arith.constant 0 : index
    %c0_0 = arith.constant 0 : index
    %0 = vector.load %arg2[%c0, %c0_0] : memref<128x40xbf16, #tpu.memory_space<vmem>>, vector<128x40xbf16>
    %c0_1 = arith.constant 0 : index
    %c0_2 = arith.constant 0 : index
    %1 = vector.load %arg3[%c0_1, %c0_2] : memref<40x8xbf16, #tpu.memory_space<vmem>>, vector<40x8xbf16>
    %cst = arith.constant dense<0.000000e+00> : vector<128x8xf32>
    %2 = tpu.matmul %0, %1, %cst {dimension_numbers = #tpu.dot_dimension_numbers<[1], [0], [0], [1], [0, 0, 1, 1], [], []>} : vector<128x40xbf16>, vector<40x8xbf16>, vector<128x8xf32> -> vector<128x8xf32>
    %c0_3 = arith.constant 0 : index
    %c0_4 = arith.constant 0 : index
    %3 = vector.load %arg4[%c0_3, %c0_4] : memref<128x8xf32, #tpu.memory_space<vmem>>, vector<128x8xf32>
    tpu.vector_store %arg4[%c0_3, %c0_4], %2 {strides = array<i32>} : memref<128x8xf32, #tpu.memory_space<vmem>>, vector<128x8xf32>,
    %c0_i32 = arith.constant 0 : i32
    %4 = arith.cmpi eq, %arg1, %c0_i32 : i32
    %5 = arith.extui %4 : i1 to i32
    %c0_i32_5 = arith.constant 0 : i32
    %6 = arith.cmpi ne, %5, %c0_i32_5 : i32
    scf.if %6 {
      %cst_20 = arith.constant 0.000000e+00 : f32
      %23 = vector.broadcast %cst_20 : f32 to vector<16x8xf32>
      %c0_21 = arith.constant 0 : index
      %c0_22 = arith.constant 0 : index
      %c0_23 = arith.constant 0 : index
      %24 = vector.load %arg5[%c0_21, %c0_22, %c0_23] : memref<1x16x8xf32, #tpu.memory_space<vmem>>, vector<1x16x8xf32>
      %25 = vector.shape_cast %24 : vector<1x16x8xf32> to vector<16x8xf32>
      %26 = vector.shape_cast %23 : vector<16x8xf32> to vector<1x16x8xf32>
      tpu.vector_store %arg5[%c0_21, %c0_22, %c0_23], %26 {strides = array<i32>} : memref<1x16x8xf32, #tpu.memory_space<vmem>>, vector<1x16x8xf32>,
    } else {
    }
    %cst_6 = arith.constant 1.000000e+00 : f32
    %7 = vector.broadcast %cst_6 : f32 to vector<8x128xf32>
    %cst_7 = arith.constant dense<0.000000e+00> : vector<8x8xf32>
    %8 = tpu.matmul %7, %2, %cst_7 {dimension_numbers = #tpu.dot_dimension_numbers<[1], [0], [0], [1], [0, 0, 1, 1], [], []>} : vector<8x128xf32>, vector<128x8xf32>, vector<8x8xf32> -> vector<8x8xf32>
    %9 = arith.mulf %2, %2 : vector<128x8xf32>
    %cst_8 = arith.constant dense<0.000000e+00> : vector<8x8xf32>
    %10 = tpu.matmul %7, %9, %cst_8 {dimension_numbers = #tpu.dot_dimension_numbers<[1], [0], [0], [1], [0, 0, 1, 1], [], []>} : vector<8x128xf32>, vector<128x8xf32>, vector<8x8xf32> -> vector<8x8xf32>
    %c0_9 = arith.constant 0 : index
    %c0_10 = arith.constant 0 : index
    %c0_11 = arith.constant 0 : index
    %11 = vector.load %arg5[%c0_9, %c0_10, %c0_11] : memref<1x16x8xf32, #tpu.memory_space<vmem>>, vector<1x8x8xf32>
    %12 = vector.shape_cast %11 : vector<1x8x8xf32> to vector<8x8xf32>
    %13 = arith.addf %12, %8 : vector<8x8xf32>
    %c0_12 = arith.constant 0 : index
    %c0_13 = arith.constant 0 : index
    %c0_14 = arith.constant 0 : index
    %14 = vector.load %arg5[%c0_12, %c0_13, %c0_14] : memref<1x16x8xf32, #tpu.memory_space<vmem>>, vector<1x8x8xf32>
    %15 = vector.shape_cast %14 : vector<1x8x8xf32> to vector<8x8xf32>
    %16 = vector.shape_cast %13 : vector<8x8xf32> to vector<1x8x8xf32>
    tpu.vector_store %arg5[%c0_12, %c0_13, %c0_14], %16 {strides = array<i32>} : memref<1x16x8xf32, #tpu.memory_space<vmem>>, vector<1x8x8xf32>,
    %c0_15 = arith.constant 0 : index
    %c8 = arith.constant 8 : index
    %c0_16 = arith.constant 0 : index
    %17 = vector.load %arg5[%c0_15, %c8, %c0_16] : memref<1x16x8xf32, #tpu.memory_space<vmem>>, vector<1x8x8xf32>
    %18 = vector.shape_cast %17 : vector<1x8x8xf32> to vector<8x8xf32>
    %19 = arith.addf %18, %10 : vector<8x8xf32>
    %c0_17 = arith.constant 0 : index
    %c8_18 = arith.constant 8 : index
    %c0_19 = arith.constant 0 : index
    %20 = vector.load %arg5[%c0_17, %c8_18, %c0_19] : memref<1x16x8xf32, #tpu.memory_space<vmem>>, vector<1x8x8xf32>
    %21 = vector.shape_cast %20 : vector<1x8x8xf32> to vector<8x8xf32>
    %22 = vector.shape_cast %19 : vector<8x8xf32> to vector<1x8x8xf32>
    tpu.vector_store %arg5[%c0_17, %c8_18, %c0_19], %22 {strides = array<i32>} : memref<1x16x8xf32, #tpu.memory_space<vmem>>, vector<1x8x8xf32>,
    return
  }
  func.func @transform_0(%arg0: i32, %arg1: i32) -> (i32, i32) {
    %c1_i32 = arith.constant 1 : i32
    %0 = arith.muli %arg0, %c1_i32 : i32
    %1 = arith.addi %0, %arg1 : i32
    %c0_i32 = arith.constant 0 : i32
    %c0_i32_0 = arith.constant 0 : i32
    return %1, %c0_i32 : i32, i32
  }
  func.func @transform_1(%arg0: i32, %arg1: i32) -> (i32, i32) {
    %c0_i32 = arith.constant 0 : i32
    %c0_i32_0 = arith.constant 0 : i32
    %c0_i32_1 = arith.constant 0 : i32
    return %c0_i32, %c0_i32_0 : i32, i32
  }
  func.func @transform_2(%arg0: i32, %arg1: i32) -> (i32, i32) {
    %c1_i32 = arith.constant 1 : i32
    %0 = arith.muli %arg0, %c1_i32 : i32
    %1 = arith.addi %0, %arg1 : i32
    %c0_i32 = arith.constant 0 : i32
    %c0_i32_0 = arith.constant 0 : i32
    return %1, %c0_i32 : i32, i32
  }
  func.func @transform_3(%arg0: i32, %arg1: i32) -> (i32, i32, i32) {
    %c0_i32 = arith.constant 0 : i32
    %c0_i32_0 = arith.constant 0 : i32
    %c0_i32_1 = arith.constant 0 : i32
    return %arg0, %c0_i32, %c0_i32_0 : i32, i32, i32
  }
}

</mosaic_0001>

<llo_original>
// kernel: tpu_custom_call.1
$region0: #{tpu_custom_call.1}
  #allocation0 [shape = 'u32[]', space=smem, size = 0x4, offset = 0x4, fixed_abs, tag = 'smem constant byte address 0x4 - core index']
  #allocation1 [shape = 'u32[72,128]{1,0:T(1,128)}', space=vmem, size = 0x9000, scoped, tag = 'internal scratch']
  %s0 = inlined_call_operand.vmem [shape: bf16[128,40], index: 0, kind: input, shape index: {}]
  %s1 = inlined_call_operand.vmem [shape: bf16[40,8], index: 1, kind: input, shape index: {}]
  %s2 = inlined_call_operand.vmem [shape: f32[128,8], index: 2, kind: output, shape index: {0}]
  %s3 = inlined_call_operand.vmem [shape: f32[1,16,8], index: 3, kind: output, shape index: {1}]
  %4 = xla_tuple %s2, %s3
  %s5 = sld [smem:[#allocation0]]
  $region30: #{tpu_custom_call.1} parent=0
    _
  %s7 = ssub.s32 1, %s5
  %s8 = scalar_select 0, %s7, %s5
  // Predicated region
  $region2: #{tpu_custom_call.1} parent=0 // pred_check
    _
  $region3: #{tpu_custom_call.1} parent=0 // pred_check_branch
    %10 = sbr.rel (0) target = $region5
  $region4: #{tpu_custom_call.1} parent=0 // pred_region
    %s11 = sadd.s32 0, 0
    %s12 = smul.u32 16, %s11
    %p13 = scmp.lt.s32.totalorder %s12, 15
    %s14 = scalar_select %p13, %s12, 15
    %s15 = smul.addr %s14, 4
    %s16 = scalar_lea.vmem %s0, %s15
    %s17 = sadd.s32 0, 0
    %s18 = smul.u32 16, %s17
  $region5: #{tpu_custom_call.1} parent=0 // pred_fallthru
    _
  // Predicated region
  $region6: #{tpu_custom_call.1} parent=0 // pred_check
    _
  $region7: #{tpu_custom_call.1} parent=0 // pred_check_branch
    %20 = sbr.rel (0) target = $region9
  $region8: #{tpu_custom_call.1} parent=0 // pred_region
    _
  $region9: #{tpu_custom_call.1} parent=0 // pred_fallthru
    _
  %s21 = sadd.s32 0, 0
  %s22 = smul.u32 16, %s21
  %p23 = scmp.lt.s32.totalorder %s22, 15
  %s24 = scalar_select %p23, %s22, 15
  %s25 = smul.addr %s24, 4
  %s26 = scalar_lea.vmem %s0, %s25
  %s27 = sadd.s32 0, 0
  %s28 = smul.u32 16, %s27
  %p29 = scmp.lt.s32.totalorder %s28, 15
  %s30 = scalar_select %p29, %s28, 15
  %s31 = smul.addr %s30, 8
  %s32 = scalar_lea.vmem %s2, %s31
  %s33 = sadd.s32 0, 0
  %s34 = smul.u32 16, %s33
  %p35 = scmp.lt.s32.totalorder %s34, 15
  %s36 = scalar_select %p35, %s34, 15
  %s37 = smul.addr %s36, 4
  %s38 = scalar_lea.vmem %s0, %s37
  %s39 = sadd.s32 0, 0
  %s40 = smul.u32 16, %s39
  %s41 = sadd.s32 0, 0
  %s42 = smul.u32 16, %s41
  %p43 = scmp.lt.s32.totalorder %s42, 15
  %s44 = scalar_select %p43, %s42, 15
  %s45 = smul.addr %s44, 8
  %s46 = scalar_lea.vmem %s2, %s45
  %s47 = sadd.s32 0, 0
  %s48 = smul.u32 16, %s47
  %v50 = vld [vmem:[%s38] sm:$0xf]
  %v51 = vld [vmem:[%s38 + $0x4] sm:$0xf]
  %v52 = vld [vmem:[%s38 + $0x8] sm:$0xf]
  %v53 = vld [vmem:[%s38 + $0xc] sm:$0xf]
  %v54 = vld [vmem:[%s38 + $0x10] sm:$0xf]
  %v55 = vld [vmem:[%s38 + $0x14] sm:$0xf]
  %v56 = vld [vmem:[%s38 + $0x18] sm:$0xf]
  %v57 = vld [vmem:[%s38 + $0x1c] sm:$0xf]
  %v58 = vld [vmem:[%s38 + $0x20] sm:$0xf]
  %v59 = vld [vmem:[%s38 + $0x24] sm:$0xf]
  %v60 = vld [vmem:[%s38 + $0x28] sm:$0xf]
  %v61 = vld [vmem:[%s38 + $0x2c] sm:$0xf]
  %v62 = vld [vmem:[%s38 + $0x30] sm:$0xf]
  %v63 = vld [vmem:[%s38 + $0x34] sm:$0xf]
  %v64 = vld [vmem:[%s38 + $0x38] sm:$0xf]
  %v65 = vld [vmem:[%s38 + $0x3c] sm:$0xf]
  %v66 = vld [vmem:[%s1] sm:$0xf]
  %v67 = vld [vmem:[%s1 + $0x4] sm:$0xf]
  %v68 = vld [vmem:[%s1 + $0x8] sm:$0xf]
  %v69 = vld [vmem:[%s1 + $0xc] sm:$0xf]
  %v70 = vld [vmem:[%s1 + $0x10] sm:$0xf]
  %v87 = vunpack.c.l.b16 %v50
  %v88 = vunpack.c.l.b16 %v51
  %v89 = vunpack.c.l.b16 %v52
  %v90 = vunpack.c.l.b16 %v53
  %v91 = vunpack.c.l.b16 %v54
  %v92 = vunpack.c.l.b16 %v55
  %v93 = vunpack.c.l.b16 %v56
  %v94 = vunpack.c.l.b16 %v57
  %v95 = vunpack.c.l.b16 %v58
  %v96 = vunpack.c.l.b16 %v59
  %v97 = vunpack.c.l.b16 %v60
  %v98 = vunpack.c.l.b16 %v61
  %v99 = vunpack.c.l.b16 %v62
  %v100 = vunpack.c.l.b16 %v63
  %v101 = vunpack.c.l.b16 %v64
  %v102 = vunpack.c.l.b16 %v65
  %v103 = vpack.c.b16 %v88, %v87
  %v104 = vpack.c.b16 %v90, %v89
  %v105 = vpack.c.b16 %v92, %v91
  %v106 = vpack.c.b16 %v94, %v93
  %v107 = vpack.c.b16 %v96, %v95
  %v108 = vpack.c.b16 %v98, %v97
  %v109 = vpack.c.b16 %v100, %v99
  %v110 = vpack.c.b16 %v102, %v101
  %v116 = vunpack.c.l.b16 %v66
  %v117 = vunpack.c.l.b16 %v67
  %v118 = vunpack.c.l.b16 %v68
  %v119 = vunpack.c.l.b16 %v69
  %v120 = vunpack.c.l.b16 %v70
  %v121 = vpack.c.b16 %v117, %v116
  %v122 = vpack.c.b16 %v119, %v118
  %v123 = vpack.c.b16 %v120, %v120
  %vm126 = vcmask 326656
  %v128 = vsel %vm126, %v103, 0
  %v131 = vsel %vm126, %v104, 0
  %v134 = vsel %vm126, %v105, 0
  %v137 = vsel %vm126, %v106, 0
  %v140 = vsel %vm126, %v107, 0
  %v143 = vsel %vm126, %v108, 0
  %v146 = vsel %vm126, %v109, 0
  %v149 = vsel %vm126, %v110, 0
  %vm151 = vcmask 1043456
  %v153 = vsel %vm151, %v123, 0
  %155 = vmatpush.bf16.msra.mxu0 0
  %156 = vmatpush.bf16.msra.mxu0 0
  %157 = vmatpush.bf16.msra.mxu0 0
  %158 = vmatpush.bf16.msra.mxu0 0
  %159 = vmatpush.bf16.msra.mxu0 0
  %160 = vmatpush.bf16.msra.mxu0 %v153
  %161 = vmatpush.bf16.msra.mxu0 %v122
  %162 = vmatpush.bf16.msra.mxu0 %v121
  %163 = vmatmul.bf16.gmra.mxu0 %v128
  %v164 = vpop.f32.mrf.mxu0
  %v165 = vadd.f32 0.0, %v164
  %v166 = vpop.f32.mrf.mxu0
  %v167 = vadd.f32 0.0, %v166
  %168 = vmatmul.bf16.gmra.mxu0 %v131
  %v169 = vpop.f32.mrf.mxu0
  %v170 = vadd.f32 0.0, %v169
  %v171 = vpop.f32.mrf.mxu0
  %v172 = vadd.f32 0.0, %v171
  %173 = vmatmul.bf16.gmra.mxu0 %v134
  %v174 = vpop.f32.mrf.mxu0
  %v175 = vadd.f32 0.0, %v174
  %v176 = vpop.f32.mrf.mxu0
  %v177 = vadd.f32 0.0, %v176
  %178 = vmatmul.bf16.gmra.mxu0 %v137
  %v179 = vpop.f32.mrf.mxu0
  %v180 = vadd.f32 0.0, %v179
  %v181 = vpop.f32.mrf.mxu0
  %v182 = vadd.f32 0.0, %v181
  %183 = vmatmul.bf16.gmra.mxu0 %v140
  %v184 = vpop.f32.mrf.mxu0
  %v185 = vadd.f32 0.0, %v184
  %v186 = vpop.f32.mrf.mxu0
  %v187 = vadd.f32 0.0, %v186
  %188 = vmatmul.bf16.gmra.mxu0 %v143
  %v189 = vpop.f32.mrf.mxu0
  %v190 = vadd.f32 0.0, %v189
  %v191 = vpop.f32.mrf.mxu0
  %v192 = vadd.f32 0.0, %v191
  %193 = vmatmul.bf16.gmra.mxu0 %v146
  %v194 = vpop.f32.mrf.mxu0
  %v195 = vadd.f32 0.0, %v194
  %v196 = vpop.f32.mrf.mxu0
  %v197 = vadd.f32 0.0, %v196
  %198 = vmatmul.bf16.gmra.mxu0 %v149
  %v199 = vpop.f32.mrf.mxu0
  %v200 = vadd.f32 0.0, %v199
  %v201 = vpop.f32.mrf.mxu0
  %v202 = vadd.f32 0.0, %v201
  %203 = vdwg.mxu0
  %vm204 = vcmask 64512
  %205 = vst.msk [vmem:[%s46] sm:$0xff] %vm204, %v165
  %206 = vst.msk [vmem:[%s46 + $0x8] sm:$0xff] %vm204, %v167
  %207 = vst.msk [vmem:[%s46 + $0x10] sm:$0xff] %vm204, %v170
  %208 = vst.msk [vmem:[%s46 + $0x18] sm:$0xff] %vm204, %v172
  %209 = vst.msk [vmem:[%s46 + $0x20] sm:$0xff] %vm204, %v175
  %210 = vst.msk [vmem:[%s46 + $0x28] sm:$0xff] %vm204, %v177
  %211 = vst.msk [vmem:[%s46 + $0x30] sm:$0xff] %vm204, %v180
  %212 = vst.msk [vmem:[%s46 + $0x38] sm:$0xff] %vm204, %v182
  %213 = vst.msk [vmem:[%s46 + $0x40] sm:$0xff] %vm204, %v185
  %214 = vst.msk [vmem:[%s46 + $0x48] sm:$0xff] %vm204, %v187
  %215 = vst.msk [vmem:[%s46 + $0x50] sm:$0xff] %vm204, %v190
  %216 = vst.msk [vmem:[%s46 + $0x58] sm:$0xff] %vm204, %v192
  %217 = vst.msk [vmem:[%s46 + $0x60] sm:$0xff] %vm204, %v195
  %218 = vst.msk [vmem:[%s46 + $0x68] sm:$0xff] %vm204, %v197
  %219 = vst.msk [vmem:[%s46 + $0x70] sm:$0xff] %vm204, %v200
  %220 = vst.msk [vmem:[%s46 + $0x78] sm:$0xff] %vm204, %v202
  %p221 = scmp.eq.s32.totalorder 0, 0
  // Predicated region
  $region10: #{tpu_custom_call.1} parent=0 // pred_check
    %p222 = pneg %p221
  $region11: #{tpu_custom_call.1} parent=0 // pred_check_branch
    %224 = sbr.rel (%p222) target = $region13
  $region12: #{tpu_custom_call.1} parent=0 // pred_region
    %225 = vst.msk [vmem:[%s3] sm:$0xff] %vm204, 0.0
    %226 = vst.msk [vmem:[%s3 + $0x8] sm:$0xff] %vm204, 0.0
  $region13: #{tpu_custom_call.1} parent=0 // pred_fallthru
    _
  %227 = vmatpush.msra.mxu0 %v202
  %228 = vmatpush.msra.mxu0 %v200
  %229 = vmatpush.msra.mxu0 %v197
  %230 = vmatpush.msra.mxu0 %v195
  %231 = vmatpush.msra.mxu0 %v192
  %232 = vmatpush.msra.mxu0 %v190
  %233 = vmatpush.msra.mxu0 %v187
  %234 = vmatpush.msra.mxu0 %v185
  %235 = vmatpush.msra.mxu0 %v182
  %236 = vmatpush.msra.mxu0 %v180
  %237 = vmatpush.msra.mxu0 %v177
  %238 = vmatpush.msra.mxu0 %v175
  %239 = vmatpush.msra.mxu0 %v172
  %240 = vmatpush.msra.mxu0 %v170
  %241 = vmatpush.msra.mxu0 %v167
  %242 = vmatpush.msra.mxu0 %v165
  %243 = vmatmul.f32.gmra.mxu0 1.0
  %v244 = vpop.f32.mrf.mxu0
  %v245 = vadd.f32 0.0, %v244
  %246 = vdwg.mxu0
  %v247 = vmul.f32 %v165, %v165
  %v248 = vmul.f32 %v167, %v167
  %v249 = vmul.f32 %v170, %v170
  %v250 = vmul.f32 %v172, %v172
  %v251 = vmul.f32 %v175, %v175
  %v252 = vmul.f32 %v177, %v177
  %v253 = vmul.f32 %v180, %v180
  %v254 = vmul.f32 %v182, %v182
  %v255 = vmul.f32 %v185, %v185
  %v256 = vmul.f32 %v187, %v187
  %v257 = vmul.f32 %v190, %v190
  %v258 = vmul.f32 %v192, %v192
  %v259 = vmul.f32 %v195, %v195
  %v260 = vmul.f32 %v197, %v197
  %v261 = vmul.f32 %v200, %v200
  %v262 = vmul.f32 %v202, %v202
  %263 = vmatpush.msra.mxu0 %v262
  %264 = vmatpush.msra.mxu0 %v261
  %265 = vmatpush.msra.mxu0 %v260
  %266 = vmatpush.msra.mxu0 %v259
  %267 = vmatpush.msra.mxu0 %v258
  %268 = vmatpush.msra.mxu0 %v257
  %269 = vmatpush.msra.mxu0 %v256
  %270 = vmatpush.msra.mxu0 %v255
  %271 = vmatpush.msra.mxu0 %v254
  %272 = vmatpush.msra.mxu0 %v253
  %273 = vmatpush.msra.mxu0 %v252
  %274 = vmatpush.msra.mxu0 %v251
  %275 = vmatpush.msra.mxu0 %v250
  %276 = vmatpush.msra.mxu0 %v249
  %277 = vmatpush.msra.mxu0 %v248
  %278 = vmatpush.msra.mxu0 %v247
  %279 = vmatmul.f32.gmra.mxu0 1.0
  %v280 = vpop.f32.mrf.mxu0
  %v281 = vadd.f32 0.0, %v280
  %282 = vdwg.mxu0
  %v283 = vld [vmem:[%s3] sm:$0xff]
  %v284 = vadd.f32 %v283, %v245
  %285 = vst.msk [vmem:[%s3] sm:$0xff] %vm204, %v284
  %v286 = vld [vmem:[%s3 + $0x8] sm:$0xff]
  %v287 = vadd.f32 %v286, %v281
  %288 = vst.msk [vmem:[%s3 + $0x8] sm:$0xff] %vm204, %v287
  %s289 = sadd.s32 0, 0
  %s290 = smul.u32 16, %s289
  %p291 = scmp.lt.s32.totalorder %s290, 15
  %s292 = scalar_select %p291, %s290, 15
  %s293 = smul.addr %s292, 8
  %s294 = scalar_lea.vmem %s2, %s293
  // Predicated region
  $region14: #{tpu_custom_call.1} parent=0 // pred_check
    _
  $region15: #{tpu_custom_call.1} parent=0 // pred_check_branch
    %296 = sbr.rel (0) target = $region17
  $region16: #{tpu_custom_call.1} parent=0 // pred_region
    %s297 = sadd.s32 0, 0
    %s298 = smul.u32 16, %s297
  $region17: #{tpu_custom_call.1} parent=0 // pred_fallthru
    _
  // Predicated region
  $region18: #{tpu_custom_call.1} parent=0 // pred_check
    _
  $region19: #{tpu_custom_call.1} parent=0 // pred_check_branch
    %300 = sbr.rel (0) target = $region21
  $region20: #{tpu_custom_call.1} parent=0 // pred_region
    _
  $region21: #{tpu_custom_call.1} parent=0 // pred_fallthru
    _
  // Predicated region
  $region22: #{tpu_custom_call.1} parent=0 // pred_check
    _
  $region23: #{tpu_custom_call.1} parent=0 // pred_check_branch
    %302 = sbr.rel (0) target = $region25
  $region24: #{tpu_custom_call.1} parent=0 // pred_region
    %s303 = sadd.s32 0, 0
    %s304 = smul.u32 16, %s303
    %p305 = scmp.lt.s32.totalorder %s304, 15
    %s306 = scalar_select %p305, %s304, 15
    %s307 = smul.addr %s306, 8
    %s308 = scalar_lea.vmem %s2, %s307
  $region25: #{tpu_custom_call.1} parent=0 // pred_fallthru
    _
  // Predicated region
  $region26: #{tpu_custom_call.1} parent=0 // pred_check
    _
  $region27: #{tpu_custom_call.1} parent=0 // pred_check_branch
    %310 = sbr.rel (0) target = $region29
  $region28: #{tpu_custom_call.1} parent=0 // pred_region
    _
  $region29: #{tpu_custom_call.1} parent=0 // pred_fallthru
    _

</llo_original>
